<compile_context>
chip_gen: v5e
topology: v5e:2x2
jax: 0.10.0
libtpu: 0.0.40
codegen_flags: <defaults>
</compile_context>

<pallas_src>
import functools

import jax
import jax.numpy as jnp
from jax.experimental import pallas as pl
from jax.experimental.pallas import tpu as pltpu


# ------------------------------ Pallas kernel -------------------------------

def _gcn_fused_kernel(x_ref, w1m_ref, w2_ref, o_ref):
    # x_ref  : (TB, S, N)  TB batch elements (S = num_state, N = num_node), f32
    # w1m_ref: (N, N)      bf16, conv1 weight pre-transposed with -I folded in
    # w2_ref : (S, S)      bf16, conv2 weight
    tb, s, n = x_ref.shape

    # conv1 over the node axis + residual, with the batch folded into M:
    #   h = x @ (W1^T - I)   as ONE (TB*S, N) @ (N, N) MXU matmul.
    x = x_ref[...].astype(jnp.bfloat16).reshape(tb * s, n)
    h = jnp.dot(x, w1m_ref[...],
                preferred_element_type=jnp.float32)        # (TB*S, N) f32
    h = h.astype(jnp.bfloat16)

    # conv2 over the state axis + ReLU:  out[b] = relu(W2 @ h[b]).
    # TB is a tiny static count (1 or 2 here) -> unrolled loop, no layout
    # shuffles (slices along the sublane-major axis are tile-aligned).
    w2 = w2_ref[...]
    for b in range(tb):
        hb = h[b * s:(b + 1) * s, :]                       # (S, N) bf16
        y = jnp.dot(w2, hb, preferred_element_type=jnp.float32)
        o_ref[b] = jnp.maximum(y, 0.0)                     # (S, N) f32 store


def _batch_per_step(batch, num_state, num_node):
    """How many batch elements to fold into one grid step.

    Single-TC chips (v5e / v6e): fold the whole batch -> grid=(1,); each grid
    step costs ~0.35 us of pipeline overhead, which dominates this kernel.
    2-TC chips (v7x, megacore v4): keep >= 2 grid steps so both TensorCores
    get work under dimension_semantics=("parallel",).
    """
    try:
        kind = jax.devices()[0].device_kind.lower()
    except Exception:  # defensive: never fail the forward on introspection
        kind = ""
    two_cores = any(tag in kind for tag in ("v7", "7x", "v4", "v5p"))
    want = max(1, batch // 2) if two_cores else batch
    # Keep the per-step x / out block comfortably small (<= ~2 MiB f32).
    cap = max(1, (2 << 20) // (num_state * num_node * 4))
    want = max(1, min(want, cap, batch))
    # Must divide the batch exactly (grid steps all take full blocks).
    while batch % want:
        want -= 1
    return want


def gcn_forward(params, x):
    """Fused GCN forward. x: (B, num_state, num_node) float32 -> same shape."""
    w1m, w2 = params["w1m"], params["w2"]
    B, S, N = x.shape
    assert w1m.shape == (N, N) and w2.shape == (S, S)
    # (8, 128) tiling constraint -> lane-dense, unmasked loads/stores.
    assert S % 8 == 0 and N % 128 == 0, (S, N)

    tb = _batch_per_step(B, S, N)
    grid = (B // tb,)

    return pl.pallas_call(
        _gcn_fused_kernel,
        out_shape=jax.ShapeDtypeStruct((B, S, N), jnp.float32),
        grid=grid,
        in_specs=[
            pl.BlockSpec((tb, S, N), lambda g: (g, 0, 0)),   # x  (per step)
            pl.BlockSpec((N, N), lambda g: (0, 0)),          # W1^T - I (resident)
            pl.BlockSpec((S, S), lambda g: (0, 0)),          # W2       (resident)
        ],
        out_specs=pl.BlockSpec((tb, S, N), lambda g: (g, 0, 0)),
        compiler_params=pltpu.CompilerParams(
            dimension_semantics=("parallel",)),              # 2 TCs on v7x
    )(x, w1m, w2)


# --------------------------- reference & params ------------------------------

def gcn_reference(params, x):
    """Pure-JAX f32 reference with the original PyTorch module's math."""
    hp = jax.lax.Precision.HIGHEST
    w1t, w2 = params["w1t_f32"], params["w2_f32"]
    h = jnp.einsum("bsn,nm->bsm", x, w1t, precision=hp) - x
    y = jnp.einsum("ts,bsn->btn", w2, h, precision=hp)
    return jnp.maximum(y, 0.0)


def init_params(key, num_state, num_node):
    k1, k2 = jax.random.split(key)
    # PyTorch Conv1d(k=1, bias=False) weights are (C_out, C_in, 1); keep the
    # 2-D (C_out, C_in) view.
    w1 = 0.1 * jax.random.normal(k1, (num_node, num_node), jnp.float32)
    w2 = 0.1 * jax.random.normal(k2, (num_state, num_state), jnp.float32)
    eye = jnp.eye(num_node, dtype=jnp.float32)
    return {
        # Kernel operands: conv1 weight transposed ONCE with the residual's
        # "-I" folded in, stored bf16 (MXU-native, half the DMA bytes).
        "w1m": (w1.T - eye).astype(jnp.bfloat16),
        "w2": w2.astype(jnp.bfloat16),
        # f32 masters, used only by the reference check.
        "w1t_f32": w1.T,
        "w2_f32": w2,
    }


# ----------------------------------- main ------------------------------------

if __name__ == "__main__":
    B, num_state, num_node = 2, 64, 128
    key = jax.random.PRNGKey(0)
    kp, kx = jax.random.split(key)

    params = init_params(kp, num_state, num_node)
    x = jax.random.normal(kx, (B, num_state, num_node), jnp.float32)

    fwd = jax.jit(functools.partial(gcn_forward, params))
    out = fwd(x)
    jax.block_until_ready(out)

    assert out.shape == (B, num_state, num_node), out.shape
    assert bool(jnp.all(jnp.isfinite(out)))

    # Relative-L2 self-check against a pure-JAX f32 reference (tolerance
    # absorbs the bf16 matmul inputs; accumulation is f32).
    ref = gcn_reference(params, x)
    rel_err = float(jnp.linalg.norm(out - ref) / (jnp.linalg.norm(ref) + 1e-12))
    assert rel_err < 2e-2, rel_err

    print("KERNEL_OK")
</pallas_src>

<mosaic_0001>
module attributes {stable_mosaic.version = 11 : i64} {
  func.func @_gcn_fused_kernel(%arg0: i32, %arg1: memref<2x64x128xf32, #tpu.memory_space<vmem>>, %arg2: memref<128x128xbf16, #tpu.memory_space<vmem>>, %arg3: memref<64x64xbf16, #tpu.memory_space<vmem>>, %arg4: memref<2x64x128xf32, #tpu.memory_space<vmem>>) attributes {dimension_semantics = [#tpu.dimension_semantics<parallel>], iteration_bounds = array<i64: 1>, scalar_prefetch = 0 : i64, scratch_operands = 0 : i64, tpu.core_type = #tpu.core_type<tc>, window_params = [{transform_indices = @transform_0, window_bounds = array<i64: 2, 64, 128>}, {pipeline_mode = #tpu.pipeline_mode<synchronous>, transform_indices = @transform_1, window_bounds = array<i64: 128, 128>}, {pipeline_mode = #tpu.pipeline_mode<synchronous>, transform_indices = @transform_2, window_bounds = array<i64: 64, 64>}, {transform_indices = @transform_3, window_bounds = array<i64: 2, 64, 128>}]} {
    %c0 = arith.constant 0 : index
    %c0_0 = arith.constant 0 : index
    %c0_1 = arith.constant 0 : index
    %0 = vector.load %arg1[%c0, %c0_0, %c0_1] : memref<2x64x128xf32, #tpu.memory_space<vmem>>, vector<2x64x128xf32>
    %1 = arith.truncf %0 : vector<2x64x128xf32> to vector<2x64x128xbf16>
    %2 = vector.shape_cast %1 : vector<2x64x128xbf16> to vector<128x128xbf16>
    %c0_2 = arith.constant 0 : index
    %c0_3 = arith.constant 0 : index
    %3 = vector.load %arg2[%c0_2, %c0_3] : memref<128x128xbf16, #tpu.memory_space<vmem>>, vector<128x128xbf16>
    %cst = arith.constant dense<0.000000e+00> : vector<128x128xf32>
    %4 = tpu.matmul %2, %3, %cst {dimension_numbers = #tpu.dot_dimension_numbers<[1], [0], [0], [1], [0, 0, 1, 1], [], []>} : vector<128x128xbf16>, vector<128x128xbf16>, vector<128x128xf32> -> vector<128x128xf32>
    %5 = arith.truncf %4 : vector<128x128xf32> to vector<128x128xbf16>
    %c0_4 = arith.constant 0 : index
    %c0_5 = arith.constant 0 : index
    %6 = vector.load %arg3[%c0_4, %c0_5] : memref<64x64xbf16, #tpu.memory_space<vmem>>, vector<64x64xbf16>
    %7 = vector.extract_strided_slice %5 {offsets = [0, 0], sizes = [64, 128], strides = [1, 1]} : vector<128x128xbf16> to vector<64x128xbf16>
    %cst_6 = arith.constant dense<0.000000e+00> : vector<64x128xf32>
    %8 = tpu.matmul %6, %7, %cst_6 {dimension_numbers = #tpu.dot_dimension_numbers<[1], [0], [0], [1], [0, 0, 1, 1], [], []>} : vector<64x64xbf16>, vector<64x128xbf16>, vector<64x128xf32> -> vector<64x128xf32>
    %cst_7 = arith.constant 0.000000e+00 : f32
    %9 = vector.broadcast %cst_7 : f32 to vector<64x128xf32>
    %10 = arith.maximumf %8, %9 : vector<64x128xf32>
    %c0_8 = arith.constant 0 : index
    %c0_9 = arith.constant 0 : index
    %c0_10 = arith.constant 0 : index
    %11 = vector.load %arg4[%c0_8, %c0_9, %c0_10] : memref<2x64x128xf32, #tpu.memory_space<vmem>>, vector<1x64x128xf32>
    %12 = vector.shape_cast %11 : vector<1x64x128xf32> to vector<64x128xf32>
    %13 = vector.shape_cast %10 : vector<64x128xf32> to vector<1x64x128xf32>
    tpu.vector_store %arg4[%c0_8, %c0_9, %c0_10], %13 {strides = array<i32>} : memref<2x64x128xf32, #tpu.memory_space<vmem>>, vector<1x64x128xf32>,
    %14 = vector.extract_strided_slice %5 {offsets = [64, 0], sizes = [64, 128], strides = [1, 1]} : vector<128x128xbf16> to vector<64x128xbf16>
    %cst_11 = arith.constant dense<0.000000e+00> : vector<64x128xf32>
    %15 = tpu.matmul %6, %14, %cst_11 {dimension_numbers = #tpu.dot_dimension_numbers<[1], [0], [0], [1], [0, 0, 1, 1], [], []>} : vector<64x64xbf16>, vector<64x128xbf16>, vector<64x128xf32> -> vector<64x128xf32>
    %cst_12 = arith.constant 0.000000e+00 : f32
    %16 = vector.broadcast %cst_12 : f32 to vector<64x128xf32>
    %17 = arith.maximumf %15, %16 : vector<64x128xf32>
    %c1 = arith.constant 1 : index
    %c0_13 = arith.constant 0 : index
    %c0_14 = arith.constant 0 : index
    %18 = vector.load %arg4[%c1, %c0_13, %c0_14] : memref<2x64x128xf32, #tpu.memory_space<vmem>>, vector<1x64x128xf32>
    %19 = vector.shape_cast %18 : vector<1x64x128xf32> to vector<64x128xf32>
    %20 = vector.shape_cast %17 : vector<64x128xf32> to vector<1x64x128xf32>
    tpu.vector_store %arg4[%c1, %c0_13, %c0_14], %20 {strides = array<i32>} : memref<2x64x128xf32, #tpu.memory_space<vmem>>, vector<1x64x128xf32>,
    return
  }
  func.func @transform_0(%arg0: i32) -> (i32, i32, i32) {
    %c0_i32 = arith.constant 0 : i32
    %c0_i32_0 = arith.constant 0 : i32
    %c0_i32_1 = arith.constant 0 : i32
    return %arg0, %c0_i32, %c0_i32_0 : i32, i32, i32
  }
  func.func @transform_1(%arg0: i32) -> (i32, i32) {
    %c0_i32 = arith.constant 0 : i32
    %c0_i32_0 = arith.constant 0 : i32
    %c0_i32_1 = arith.constant 0 : i32
    return %c0_i32, %c0_i32_0 : i32, i32
  }
  func.func @transform_2(%arg0: i32) -> (i32, i32) {
    %c0_i32 = arith.constant 0 : i32
    %c0_i32_0 = arith.constant 0 : i32
    %c0_i32_1 = arith.constant 0 : i32
    return %c0_i32, %c0_i32_0 : i32, i32
  }
  func.func @transform_3(%arg0: i32) -> (i32, i32, i32) {
    %c0_i32 = arith.constant 0 : i32
    %c0_i32_0 = arith.constant 0 : i32
    %c0_i32_1 = arith.constant 0 : i32
    return %arg0, %c0_i32, %c0_i32_0 : i32, i32, i32
  }
}

</mosaic_0001>

<llo_original>
// kernel: gcn_forward.1
$region0: #{gcn_forward.1}
  #allocation0 [shape = 'u32[]', space=smem, size = 0x4, offset = 0x4, fixed_abs, tag = 'smem constant byte address 0x4 - core index']
  #allocation1 [shape = 'u32[72,128]{1,0:T(1,128)}', space=vmem, size = 0x9000, scoped, tag = 'internal scratch']
  %s0 = inlined_call_operand.hbm [shape: f32[2,64,128], index: 0, kind: input, shape index: {}]
  %s1 = inlined_call_operand.hbm [shape: bf16[128,128], index: 1, kind: input, shape index: {}]
  %s2 = inlined_call_operand.hbm [shape: bf16[64,64], index: 2, kind: input, shape index: {}]
  %s3 = inlined_call_operand.hbm [shape: f32[2,64,128], index: 3, kind: output, shape index: {}]
  %s4 = sld [smem:[#allocation0]]
  $region34: #{gcn_forward.1} parent=0
    _
  %s6 = ssub.s32 1, %s4
  %s7 = scalar_select 0, %s6, %s4
  $region1: #{gcn_forward.1} parent=0
    #allocation2 [shape = 'u8[65536]{0}', space=vmem, size = 0x10000, scoped, tag = 'input window, operand 0, single buffered']
    #allocation3 [shape = 's32[1]{0}', space=sflag, size = 0x4, scoped, tag = 'scoped memory for gcn_forward.1']
    #allocation4 [shape = 's32[1]{0}', space=sflag, size = 0x4, scoped, tag = 'scoped memory for gcn_forward.1']
    #allocation5 [shape = 'u8[32768]{0}', space=vmem, size = 0x8000, scoped, tag = 'input window, operand 1, single buffered']
    #allocation6 [shape = 's32[1]{0}', space=sflag, size = 0x4, scoped, tag = 'scoped memory for gcn_forward.1']
    #allocation7 [shape = 'u8[16384]{0}', space=vmem, size = 0x4000, scoped, tag = 'input window, operand 2, single buffered']
    #allocation8 [shape = 'u8[65536]{0}', space=vmem, size = 0x10000, scoped, tag = 'output window, operand 0, single buffered']
    %8 = vsyncpa [#allocation3], 0
    %9 = vsyncpa [#allocation6], 0
    %10 = vsyncpa [#allocation4], 0
    // Predicated region
    $region2: #{gcn_forward.1} parent=1 // pred_check
      _
    $region3: #{gcn_forward.1} parent=1 // pred_check_branch
      %12 = sbr.rel (0) target = $region5
    $region4: #{gcn_forward.1} parent=1 // pred_region
      %14 = vsyncadd [#allocation3], 0
      %s15 = sshll.u32 %s0, 4
      %s16 = int_to_ptr.hbm [resolvable:$true] %s15
      %s17 = sshll.u32 [#allocation2], 4
      %s18 = int_to_ptr.vmem [resolvable:$true] %s17
      %23 = dma.hbm_to_vmem [thread:$0]  %s16, 2048, %s18, [#allocation3], 128, 128, 8
    $region5: #{gcn_forward.1} parent=1 // pred_fallthru
      _
    // Predicated region
    $region6: #{gcn_forward.1} parent=1 // pred_check
      _
    $region7: #{gcn_forward.1} parent=1 // pred_check_branch
      %25 = sbr.rel (0) target = $region9
    $region8: #{gcn_forward.1} parent=1 // pred_region
      %27 = vsyncadd [#allocation6], 0
      %s28 = sshll.u32 %s1, 4
      %s29 = int_to_ptr.hbm [resolvable:$true] %s28
      %s30 = sshll.u32 [#allocation5], 4
      %s31 = int_to_ptr.vmem [resolvable:$true] %s30
      %36 = dma.hbm_to_vmem [thread:$0]  %s29, 1024, %s31, [#allocation6], 64, 64, 4
    $region9: #{gcn_forward.1} parent=1 // pred_fallthru
      _
    // Predicated region
    $region10: #{gcn_forward.1} parent=1 // pred_check
      _
    $region11: #{gcn_forward.1} parent=1 // pred_check_branch
      %38 = sbr.rel (0) target = $region13
    $region12: #{gcn_forward.1} parent=1 // pred_region
      %40 = vsyncadd [#allocation6], 0
      %s41 = sshll.u32 %s2, 4
      %s42 = int_to_ptr.hbm [resolvable:$true] %s41
      %s43 = sshll.u32 [#allocation7], 4
      %s44 = int_to_ptr.vmem [resolvable:$true] %s43
      %49 = dma.hbm_to_vmem [thread:$0]  %s42, 512, %s44, [#allocation6], 64, 64, 4
    $region13: #{gcn_forward.1} parent=1 // pred_fallthru
      _
    // Predicated region
    $region14: #{gcn_forward.1} parent=1 // pred_check
      _
    $region15: #{gcn_forward.1} parent=1 // pred_check_branch
      %51 = sbr.rel (0) target = $region17
    $region16: #{gcn_forward.1} parent=1 // pred_region
      %53 = dma.done [#allocation3], 2048
    $region17: #{gcn_forward.1} parent=1 // pred_fallthru
      _
    // Predicated region
    $region18: #{gcn_forward.1} parent=1 // pred_check
      _
    $region19: #{gcn_forward.1} parent=1 // pred_check_branch
      %55 = sbr.rel (0) target = $region21
    $region20: #{gcn_forward.1} parent=1 // pred_region
      %57 = dma.done [#allocation6], 1024
    $region21: #{gcn_forward.1} parent=1 // pred_fallthru
      _
    // Predicated region
    $region22: #{gcn_forward.1} parent=1 // pred_check
      _
    $region23: #{gcn_forward.1} parent=1 // pred_check_branch
      %59 = sbr.rel (0) target = $region25
    $region24: #{gcn_forward.1} parent=1 // pred_region
      %61 = dma.done [#allocation6], 512
    $region25: #{gcn_forward.1} parent=1 // pred_fallthru
      _
    %v63 = vld [vmem:[#allocation2] sm:$0xff]
    %v64 = vld [vmem:[#allocation2 + $0x8] sm:$0xff]
    %v65 = vld [vmem:[#allocation2 + $0x10] sm:$0xff]
    %v66 = vld [vmem:[#allocation2 + $0x18] sm:$0xff]
    %v67 = vld [vmem:[#allocation2 + $0x20] sm:$0xff]
    %v68 = vld [vmem:[#allocation2 + $0x28] sm:$0xff]
    %v69 = vld [vmem:[#allocation2 + $0x30] sm:$0xff]
    %v70 = vld [vmem:[#allocation2 + $0x38] sm:$0xff]
    %v71 = vld [vmem:[#allocation2 + $0x40] sm:$0xff]
    %v72 = vld [vmem:[#allocation2 + $0x48] sm:$0xff]
    %v73 = vld [vmem:[#allocation2 + $0x50] sm:$0xff]
    %v74 = vld [vmem:[#allocation2 + $0x58] sm:$0xff]
    %v75 = vld [vmem:[#allocation2 + $0x60] sm:$0xff]
    %v76 = vld [vmem:[#allocation2 + $0x68] sm:$0xff]
    %v77 = vld [vmem:[#allocation2 + $0x70] sm:$0xff]
    %v78 = vld [vmem:[#allocation2 + $0x78] sm:$0xff]
    %v79 = vpack.c.bf16 %v63, %v63
    %v80 = vpack.c.bf16 %v64, %v64
    %v81 = vpack.c.bf16 %v65, %v65
    %v82 = vpack.c.bf16 %v66, %v66
    %v83 = vpack.c.bf16 %v67, %v67
    %v84 = vpack.c.bf16 %v68, %v68
    %v85 = vpack.c.bf16 %v69, %v69
    %v86 = vpack.c.bf16 %v70, %v70
    %v87 = vpack.c.bf16 %v71, %v71
    %v88 = vpack.c.bf16 %v72, %v72
    %v89 = vpack.c.bf16 %v73, %v73
    %v90 = vpack.c.bf16 %v74, %v74
    %v91 = vpack.c.bf16 %v75, %v75
    %v92 = vpack.c.bf16 %v76, %v76
    %v93 = vpack.c.bf16 %v77, %v77
    %v94 = vpack.c.bf16 %v78, %v78
    %v95 = vld [vmem:[#allocation5] sm:$0xf]
    %v96 = vld [vmem:[#allocation5 + $0x4] sm:$0xf]
    %v97 = vld [vmem:[#allocation5 + $0x8] sm:$0xf]
    %v98 = vld [vmem:[#allocation5 + $0xc] sm:$0xf]
    %v99 = vld [vmem:[#allocation5 + $0x10] sm:$0xf]
    %v100 = vld [vmem:[#allocation5 + $0x14] sm:$0xf]
    %v101 = vld [vmem:[#allocation5 + $0x18] sm:$0xf]
    %v102 = vld [vmem:[#allocation5 + $0x1c] sm:$0xf]
    %v103 = vld [vmem:[#allocation5 + $0x20] sm:$0xf]
    %v104 = vld [vmem:[#allocation5 + $0x24] sm:$0xf]
    %v105 = vld [vmem:[#allocation5 + $0x28] sm:$0xf]
    %v106 = vld [vmem:[#allocation5 + $0x2c] sm:$0xf]
    %v107 = vld [vmem:[#allocation5 + $0x30] sm:$0xf]
    %v108 = vld [vmem:[#allocation5 + $0x34] sm:$0xf]
    %v109 = vld [vmem:[#allocation5 + $0x38] sm:$0xf]
    %v110 = vld [vmem:[#allocation5 + $0x3c] sm:$0xf]
    %v127 = vunpack.c.l.b16 %v79
    %v128 = vunpack.c.l.b16 %v80
    %v129 = vunpack.c.l.b16 %v81
    %v130 = vunpack.c.l.b16 %v82
    %v131 = vunpack.c.l.b16 %v83
    %v132 = vunpack.c.l.b16 %v84
    %v133 = vunpack.c.l.b16 %v85
    %v134 = vunpack.c.l.b16 %v86
    %v135 = vunpack.c.l.b16 %v87
    %v136 = vunpack.c.l.b16 %v88
    %v137 = vunpack.c.l.b16 %v89
    %v138 = vunpack.c.l.b16 %v90
    %v139 = vunpack.c.l.b16 %v91
    %v140 = vunpack.c.l.b16 %v92
    %v141 = vunpack.c.l.b16 %v93
    %v142 = vunpack.c.l.b16 %v94
    %v143 = vpack.c.b16 %v128, %v127
    %v144 = vpack.c.b16 %v130, %v129
    %v145 = vpack.c.b16 %v132, %v131
    %v146 = vpack.c.b16 %v134, %v133
    %v147 = vpack.c.b16 %v136, %v135
    %v148 = vpack.c.b16 %v138, %v137
    %v149 = vpack.c.b16 %v140, %v139
    %v150 = vpack.c.b16 %v142, %v141
    %v175 = vunpack.c.l.b16 %v95
    %v176 = vunpack.c.l.b16 %v96
    %v177 = vunpack.c.l.b16 %v97
    %v178 = vunpack.c.l.b16 %v98
    %v179 = vunpack.c.l.b16 %v99
    %v180 = vunpack.c.l.b16 %v100
    %v181 = vunpack.c.l.b16 %v101
    %v182 = vunpack.c.l.b16 %v102
    %v183 = vunpack.c.l.b16 %v103
    %v184 = vunpack.c.l.b16 %v104
    %v185 = vunpack.c.l.b16 %v105
    %v186 = vunpack.c.l.b16 %v106
    %v187 = vunpack.c.l.b16 %v107
    %v188 = vunpack.c.l.b16 %v108
    %v189 = vunpack.c.l.b16 %v109
    %v190 = vunpack.c.l.b16 %v110
    %v191 = vpack.c.b16 %v176, %v175
    %v192 = vpack.c.b16 %v178, %v177
    %v193 = vpack.c.b16 %v180, %v179
    %v194 = vpack.c.b16 %v182, %v181
    %v195 = vpack.c.b16 %v184, %v183
    %v196 = vpack.c.b16 %v186, %v185
    %v197 = vpack.c.b16 %v188, %v187
    %v198 = vpack.c.b16 %v190, %v189
    %207 = vmatpush.bf16.msra.mxu0 %v198
    %208 = vmatpush.bf16.msra.mxu0 %v197
    %209 = vmatpush.bf16.msra.mxu0 %v196
    %210 = vmatpush.bf16.msra.mxu0 %v195
    %211 = vmatpush.bf16.msra.mxu0 %v194
    %212 = vmatpush.bf16.msra.mxu0 %v193
    %213 = vmatpush.bf16.msra.mxu0 %v192
    %214 = vmatpush.bf16.msra.mxu0 %v191
    %215 = vmatmul.bf16.gmra.mxu0 %v143
    %v216 = vpop.f32.mrf.mxu0
    %v217 = vadd.f32 0.0, %v216
    %v218 = vpop.f32.mrf.mxu0
    %v219 = vadd.f32 0.0, %v218
    %220 = vmatmul.bf16.gmra.mxu0 %v144
    %v221 = vpop.f32.mrf.mxu0
    %v222 = vadd.f32 0.0, %v221
    %v223 = vpop.f32.mrf.mxu0
    %v224 = vadd.f32 0.0, %v223
    %225 = vmatmul.bf16.gmra.mxu0 %v145
    %v226 = vpop.f32.mrf.mxu0
    %v227 = vadd.f32 0.0, %v226
    %v228 = vpop.f32.mrf.mxu0
    %v229 = vadd.f32 0.0, %v228
    %230 = vmatmul.bf16.gmra.mxu0 %v146
    %v231 = vpop.f32.mrf.mxu0
    %v232 = vadd.f32 0.0, %v231
    %v233 = vpop.f32.mrf.mxu0
    %v234 = vadd.f32 0.0, %v233
    %235 = vmatmul.bf16.gmra.mxu0 %v147
    %v236 = vpop.f32.mrf.mxu0
    %v237 = vadd.f32 0.0, %v236
    %v238 = vpop.f32.mrf.mxu0
    %v239 = vadd.f32 0.0, %v238
    %240 = vmatmul.bf16.gmra.mxu0 %v148
    %v241 = vpop.f32.mrf.mxu0
    %v242 = vadd.f32 0.0, %v241
    %v243 = vpop.f32.mrf.mxu0
    %v244 = vadd.f32 0.0, %v243
    %245 = vmatmul.bf16.gmra.mxu0 %v149
    %v246 = vpop.f32.mrf.mxu0
    %v247 = vadd.f32 0.0, %v246
    %v248 = vpop.f32.mrf.mxu0
    %v249 = vadd.f32 0.0, %v248
    %250 = vmatmul.bf16.gmra.mxu0 %v150
    %v251 = vpop.f32.mrf.mxu0
    %v252 = vadd.f32 0.0, %v251
    %v253 = vpop.f32.mrf.mxu0
    %v254 = vadd.f32 0.0, %v253
    %255 = vdwg.mxu0
    %v256 = vpack.c.bf16 %v217, %v217
    %v257 = vpack.c.bf16 %v219, %v219
    %v258 = vpack.c.bf16 %v222, %v222
    %v259 = vpack.c.bf16 %v224, %v224
    %v260 = vpack.c.bf16 %v227, %v227
    %v261 = vpack.c.bf16 %v229, %v229
    %v262 = vpack.c.bf16 %v232, %v232
    %v263 = vpack.c.bf16 %v234, %v234
    %v264 = vpack.c.bf16 %v237, %v237
    %v265 = vpack.c.bf16 %v239, %v239
    %v266 = vpack.c.bf16 %v242, %v242
    %v267 = vpack.c.bf16 %v244, %v244
    %v268 = vpack.c.bf16 %v247, %v247
    %v269 = vpack.c.bf16 %v249, %v249
    %v270 = vpack.c.bf16 %v252, %v252
    %v271 = vpack.c.bf16 %v254, %v254
    %v272 = vld [vmem:[#allocation7] sm:$0xf]
    %v273 = vld [vmem:[#allocation7 + $0x4] sm:$0xf]
    %v274 = vld [vmem:[#allocation7 + $0x8] sm:$0xf]
    %v275 = vld [vmem:[#allocation7 + $0xc] sm:$0xf]
    %v276 = vld [vmem:[#allocation7 + $0x10] sm:$0xf]
    %v277 = vld [vmem:[#allocation7 + $0x14] sm:$0xf]
    %v278 = vld [vmem:[#allocation7 + $0x18] sm:$0xf]
    %v279 = vld [vmem:[#allocation7 + $0x1c] sm:$0xf]
    %v288 = vunpack.c.l.b16 %v272
    %v289 = vunpack.c.l.b16 %v273
    %v290 = vunpack.c.l.b16 %v274
    %v291 = vunpack.c.l.b16 %v275
    %v292 = vunpack.c.l.b16 %v276
    %v293 = vunpack.c.l.b16 %v277
    %v294 = vunpack.c.l.b16 %v278
    %v295 = vunpack.c.l.b16 %v279
    %v296 = vpack.c.b16 %v289, %v288
    %v297 = vpack.c.b16 %v291, %v290
    %v298 = vpack.c.b16 %v293, %v292
    %v299 = vpack.c.b16 %v295, %v294
    %v308 = vunpack.c.l.b16 %v256
    %v309 = vunpack.c.l.b16 %v257
    %v310 = vunpack.c.l.b16 %v258
    %v311 = vunpack.c.l.b16 %v259
    %v312 = vunpack.c.l.b16 %v260
    %v313 = vunpack.c.l.b16 %v261
    %v314 = vunpack.c.l.b16 %v262
    %v315 = vunpack.c.l.b16 %v263
    %v316 = vpack.c.b16 %v309, %v308
    %v317 = vpack.c.b16 %v311, %v310
    %v318 = vpack.c.b16 %v313, %v312
    %v319 = vpack.c.b16 %v315, %v314
    %vm324 = vcmask 523264
    %v326 = vsel %vm324, %v296, 0
    %v329 = vsel %vm324, %v297, 0
    %v332 = vsel %vm324, %v298, 0
    %v335 = vsel %vm324, %v299, 0
    %337 = vmatpush.bf16.msra.mxu0 0
    %338 = vmatpush.bf16.msra.mxu0 0
    %339 = vmatpush.bf16.msra.mxu0 0
    %340 = vmatpush.bf16.msra.mxu0 0
    %341 = vmatpush.bf16.msra.mxu0 %v319
    %342 = vmatpush.bf16.msra.mxu0 %v318
    %343 = vmatpush.bf16.msra.mxu0 %v317
    %344 = vmatpush.bf16.msra.mxu0 %v316
    %345 = vmatmul.bf16.gmra.mxu0 %v326
    %v346 = vpop.f32.mrf.mxu0
    %v347 = vadd.f32 0.0, %v346
    %v348 = vpop.f32.mrf.mxu0
    %v349 = vadd.f32 0.0, %v348
    %350 = vmatmul.bf16.gmra.mxu0 %v329
    %v351 = vpop.f32.mrf.mxu0
    %v352 = vadd.f32 0.0, %v351
    %v353 = vpop.f32.mrf.mxu0
    %v354 = vadd.f32 0.0, %v353
    %355 = vmatmul.bf16.gmra.mxu0 %v332
    %v356 = vpop.f32.mrf.mxu0
    %v357 = vadd.f32 0.0, %v356
    %v358 = vpop.f32.mrf.mxu0
    %v359 = vadd.f32 0.0, %v358
    %360 = vmatmul.bf16.gmra.mxu0 %v335
    %v361 = vpop.f32.mrf.mxu0
    %v362 = vadd.f32 0.0, %v361
    %v363 = vpop.f32.mrf.mxu0
    %v364 = vadd.f32 0.0, %v363
    %365 = vdwg.mxu0
    %v366 = vmax.f32 %v347, 0.0
    %v367 = vmax.f32 %v349, 0.0
    %v368 = vmax.f32 %v352, 0.0
    %v369 = vmax.f32 %v354, 0.0
    %v370 = vmax.f32 %v357, 0.0
    %v371 = vmax.f32 %v359, 0.0
    %v372 = vmax.f32 %v362, 0.0
    %v373 = vmax.f32 %v364, 0.0
    %374 = vst [vmem:[#allocation8] sm:$0xff] %v366
    %375 = vst [vmem:[#allocation8 + $0x8] sm:$0xff] %v367
    %376 = vst [vmem:[#allocation8 + $0x10] sm:$0xff] %v368
    %377 = vst [vmem:[#allocation8 + $0x18] sm:$0xff] %v369
    %378 = vst [vmem:[#allocation8 + $0x20] sm:$0xff] %v370
    %379 = vst [vmem:[#allocation8 + $0x28] sm:$0xff] %v371
    %380 = vst [vmem:[#allocation8 + $0x30] sm:$0xff] %v372
    %381 = vst [vmem:[#allocation8 + $0x38] sm:$0xff] %v373
    %v390 = vunpack.c.l.b16 %v264
    %v391 = vunpack.c.l.b16 %v265
    %v392 = vunpack.c.l.b16 %v266
    %v393 = vunpack.c.l.b16 %v267
    %v394 = vunpack.c.l.b16 %v268
    %v395 = vunpack.c.l.b16 %v269
    %v396 = vunpack.c.l.b16 %v270
    %v397 = vunpack.c.l.b16 %v271
    %v398 = vpack.c.b16 %v391, %v390
    %v399 = vpack.c.b16 %v393, %v392
    %v400 = vpack.c.b16 %v395, %v394
    %v401 = vpack.c.b16 %v397, %v396
    %406 = vmatpush.bf16.msra.mxu0 0
    %407 = vmatpush.bf16.msra.mxu0 0
    %408 = vmatpush.bf16.msra.mxu0 0
    %409 = vmatpush.bf16.msra.mxu0 0
    %410 = vmatpush.bf16.msra.mxu0 %v401
    %411 = vmatpush.bf16.msra.mxu0 %v400
    %412 = vmatpush.bf16.msra.mxu0 %v399
    %413 = vmatpush.bf16.msra.mxu0 %v398
    %414 = vmatmul.bf16.gmra.mxu0 %v326
    %v415 = vpop.f32.mrf.mxu0
    %v416 = vadd.f32 0.0, %v415
    %v417 = vpop.f32.mrf.mxu0
    %v418 = vadd.f32 0.0, %v417
    %419 = vmatmul.bf16.gmra.mxu0 %v329
    %v420 = vpop.f32.mrf.mxu0
    %v421 = vadd.f32 0.0, %v420
    %v422 = vpop.f32.mrf.mxu0
    %v423 = vadd.f32 0.0, %v422
    %424 = vmatmul.bf16.gmra.mxu0 %v332
    %v425 = vpop.f32.mrf.mxu0
    %v426 = vadd.f32 0.0, %v425
    %v427 = vpop.f32.mrf.mxu0
    %v428 = vadd.f32 0.0, %v427
    %429 = vmatmul.bf16.gmra.mxu0 %v335
    %v430 = vpop.f32.mrf.mxu0
    %v431 = vadd.f32 0.0, %v430
    %v432 = vpop.f32.mrf.mxu0
    %v433 = vadd.f32 0.0, %v432
    %434 = vdwg.mxu0
    %v435 = vmax.f32 %v416, 0.0
    %v436 = vmax.f32 %v418, 0.0
    %v437 = vmax.f32 %v421, 0.0
    %v438 = vmax.f32 %v423, 0.0
    %v439 = vmax.f32 %v426, 0.0
    %v440 = vmax.f32 %v428, 0.0
    %v441 = vmax.f32 %v431, 0.0
    %v442 = vmax.f32 %v433, 0.0
    %s443 = scalar_lea.vmem [#allocation8], 64
    %444 = vst [vmem:[%s443] sm:$0xff] %v435
    %445 = vst [vmem:[%s443 + $0x8] sm:$0xff] %v436
    %446 = vst [vmem:[%s443 + $0x10] sm:$0xff] %v437
    %447 = vst [vmem:[%s443 + $0x18] sm:$0xff] %v438
    %448 = vst [vmem:[%s443 + $0x20] sm:$0xff] %v439
    %449 = vst [vmem:[%s443 + $0x28] sm:$0xff] %v440
    %450 = vst [vmem:[%s443 + $0x30] sm:$0xff] %v441
    %451 = vst [vmem:[%s443 + $0x38] sm:$0xff] %v442
    // Predicated region
    $region26: #{gcn_forward.1} parent=1 // pred_check
      _
    $region27: #{gcn_forward.1} parent=1 // pred_check_branch
      %453 = sbr.rel (0) target = $region29
    $region28: #{gcn_forward.1} parent=1 // pred_region
      %455 = vsyncadd [#allocation4], 0
      %s456 = sshll.u32 [#allocation8], 4
      %s457 = int_to_ptr.vmem [resolvable:$true] %s456
      %s458 = sshll.u32 %s3, 4
      %s459 = int_to_ptr.hbm [resolvable:$true] %s458
      %464 = dma.vmem_to_hbm [thread:$0]  %s457, 2048, %s459, [#allocation4], 128, 128, 8
    $region29: #{gcn_forward.1} parent=1 // pred_fallthru
      _
    // Predicated region
    $region30: #{gcn_forward.1} parent=1 // pred_check
      _
    $region31: #{gcn_forward.1} parent=1 // pred_check_branch
      %466 = sbr.rel (0) target = $region33
    $region32: #{gcn_forward.1} parent=1 // pred_region
      %468 = dma.done [#allocation4], 2048
    $region33: #{gcn_forward.1} parent=1 // pred_fallthru
      _
    %469 = vsyncpa [#allocation3], 1
    %470 = vsyncpa [#allocation6], 1
    %471 = vsyncpa [#allocation4], 1

</llo_original>
